<compile_context>
chip_gen: v7x
topology: tpu7x:2x2x1
jax: 0.10.0
libtpu: 0.0.40
codegen_flags: <defaults>
</compile_context>

<pallas_src>
import math

import jax
import jax.numpy as jnp
from jax.experimental import pallas as pl
from jax.experimental.pallas import tpu as pltpu


def _conv_gemm_kernel(p_ref, w_ref, b_ref, o_ref):
    """One grid step = one image x one spatial tile.

    p_ref: (1, KKC, TS)   im2col patches  (contraction on sublanes, spatial on lanes)
    w_ref: (Cout, KKC)    flattened weights, ordering (co | kh, kw, ci)
    b_ref: (Cout, 1)      bias
    o_ref: (1, Cout, TS)  output tile (already NCHW-ordered, lane-dense)
    """
    acc = jnp.dot(w_ref[...], p_ref[0], preferred_element_type=jnp.float32)
    o_ref[0] = (acc + b_ref[...]).astype(o_ref.dtype)


def _spatial_tile(S, max_tile=2048):
    """Largest lane tile for the HO*WO axis: full S unless S splits on 128-lane
    boundaries (block lane dim must be a multiple of 128 or the full dim)."""
    if S <= max_tile or S % 128 != 0:
        return S
    t = max_tile - (max_tile % 128)
    while t >= 128:
        if S % t == 0:
            return t
        t -= 128
    return S


def conv2d_pallas(x, weight, bias, stride, padding, dilation, *, compute_dtype=None):
    """Conv2d forward. x: (N,Cin,H,W); weight: (Cout,Cin,KH,KW); bias: (Cout,)."""
    N, Cin, H, W = x.shape
    Cout, Cin_w, KH, KW = weight.shape
    assert Cin_w == Cin, "groups > 1 not supported"  # TODO(synk): groups
    sh, sw = stride
    ph, pw = padding
    dh, dw = dilation

    HO = (H + 2 * ph - dh * (KH - 1) - 1) // sh + 1
    WO = (W + 2 * pw - dw * (KW - 1) - 1) // sw + 1
    S = HO * WO
    KKC = KH * KW * Cin

    # ---- glue (plain JAX, fused by XLA under jit): pad + im2col directly into
    # the lane-dense GEMM layout (contraction on sublanes, spatial on lanes). ----
    xp = jnp.pad(x, ((0, 0), (0, 0), (ph, ph), (pw, pw)))
    taps = [
        xp[:, :,
           kh * dh: kh * dh + (HO - 1) * sh + 1: sh,
           kw * dw: kw * dw + (WO - 1) * sw + 1: sw]
        for kh in range(KH) for kw in range(KW)
    ]                                                       # each (N, Cin, HO, WO)
    patches = jnp.stack(taps, axis=1).reshape(N, KKC, S)    # (N, KH*KW*Cin, HO*WO)
    wmat = jnp.transpose(weight, (0, 2, 3, 1)).reshape(Cout, KKC)
    b2 = bias.reshape(Cout, 1)

    if compute_dtype is not None:                # e.g. jnp.bfloat16 on v6e/v7x
        patches = patches.astype(compute_dtype)
        wmat = wmat.astype(compute_dtype)

    TS = _spatial_tile(S)
    grid = (N, S // TS)

    out = pl.pallas_call(
        _conv_gemm_kernel,
        out_shape=jax.ShapeDtypeStruct((N, Cout, S), jnp.float32),
        grid_spec=pltpu.PrefetchScalarGridSpec(
            num_scalar_prefetch=0,
            grid=grid,
            in_specs=[
                pl.BlockSpec((1, KKC, TS), lambda n, s: (n, 0, s)),
                pl.BlockSpec((Cout, KKC), lambda n, s: (0, 0)),
                pl.BlockSpec((Cout, 1), lambda n, s: (0, 0)),
            ],
            out_specs=pl.BlockSpec((1, Cout, TS), lambda n, s: (n, 0, s)),
        ),
        compiler_params=pltpu.CompilerParams(
            dimension_semantics=("parallel", "parallel")),
    )(patches, wmat, b2)

    return out.reshape(N, Cout, HO, WO)          # free metadata reshape (NCHW)


if __name__ == "__main__":
    # Module config: Conv(dim=2, in_channels=4, out_channels=8, kernel_size=3,
    #                     stride=2, padding=1, dilation=1, groups=1, bias=True)
    N, Cin, Cout, H, W = 2, 4, 8, 16, 16
    K = 3
    stride, padding, dilation = (2, 2), (1, 1), (1, 1)

    key = jax.random.PRNGKey(0)
    kx, kw = jax.random.split(key)

    x = jax.random.normal(kx, (N, Cin, H, W), dtype=jnp.float32)

    # kaiming_normal_ (fan_in mode, gain=sqrt(2)) on nn.Conv2d weight of shape
    # (Cout, Cin, KH, KW): fan_in = Cin * KH * KW.
    fan_in = Cin * K * K
    std = math.sqrt(2.0 / fan_in)
    weight = std * jax.random.normal(kw, (Cout, Cin, K, K), dtype=jnp.float32)
    bias = jnp.zeros((Cout,), dtype=jnp.float32)  # init.constant_(bias, 0)

    conv_fn = jax.jit(lambda xx, ww, bb: conv2d_pallas(xx, ww, bb, stride, padding, dilation))
    y = conv_fn(x, weight, bias)
    y = jax.block_until_ready(y)

    # Silent correctness check against XLA's convolution (== nn.Conv2d forward).
    ref = jax.lax.conv_general_dilated(
        x, weight,
        window_strides=stride,
        padding=[(padding[0], padding[0]), (padding[1], padding[1])],
        rhs_dilation=dilation,
        dimension_numbers=("NCHW", "OIHW", "NCHW"),
        precision=jax.lax.Precision.HIGHEST,
    ) + bias.reshape(1, Cout, 1, 1)

    HO = (H + 2 * padding[0] - dilation[0] * (K - 1) - 1) // stride[0] + 1
    WO = (W + 2 * padding[1] - dilation[1] * (K - 1) - 1) // stride[1] + 1
    assert y.shape == (N, Cout, HO, WO)
    assert jnp.allclose(y, ref, atol=1e-4, rtol=1e-4)

    print("KERNEL_OK")
</pallas_src>

<mosaic_0001>
module attributes {stable_mosaic.version = 11 : i64} {
  func.func @_conv_gemm_kernel(%arg0: i32, %arg1: i32, %arg2: memref<1x36x64xf32, #tpu.memory_space<vmem>>, %arg3: memref<8x36xf32, #tpu.memory_space<vmem>>, %arg4: memref<8x1xf32, #tpu.memory_space<vmem>>, %arg5: memref<1x8x64xf32, #tpu.memory_space<vmem>>) attributes {dimension_semantics = [#tpu.dimension_semantics<parallel>, #tpu.dimension_semantics<parallel>], iteration_bounds = array<i64: 2, 1>, scalar_prefetch = 0 : i64, scratch_operands = 0 : i64, tpu.core_type = #tpu.core_type<tc>, window_params = [{transform_indices = @transform_0, window_bounds = array<i64: 1, 36, 64>}, {pipeline_mode = #tpu.pipeline_mode<synchronous>, transform_indices = @transform_1, window_bounds = array<i64: 8, 36>}, {pipeline_mode = #tpu.pipeline_mode<synchronous>, transform_indices = @transform_2, window_bounds = array<i64: 8, 1>}, {transform_indices = @transform_3, window_bounds = array<i64: 1, 8, 64>}]} {
    %c0 = arith.constant 0 : index
    %c0_0 = arith.constant 0 : index
    %0 = vector.load %arg3[%c0, %c0_0] : memref<8x36xf32, #tpu.memory_space<vmem>>, vector<8x36xf32>
    %c0_1 = arith.constant 0 : index
    %c0_2 = arith.constant 0 : index
    %c0_3 = arith.constant 0 : index
    %1 = vector.load %arg2[%c0_1, %c0_2, %c0_3] : memref<1x36x64xf32, #tpu.memory_space<vmem>>, vector<1x36x64xf32>
    %2 = vector.shape_cast %1 : vector<1x36x64xf32> to vector<36x64xf32>
    %cst = arith.constant dense<0.000000e+00> : vector<8x64xf32>
    %3 = tpu.matmul %0, %2, %cst {dimension_numbers = #tpu.dot_dimension_numbers<[1], [0], [0], [1], [0, 0, 1, 1], [], []>} : vector<8x36xf32>, vector<36x64xf32>, vector<8x64xf32> -> vector<8x64xf32>
    %c0_4 = arith.constant 0 : index
    %c0_5 = arith.constant 0 : index
    %4 = vector.load %arg4[%c0_4, %c0_5] : memref<8x1xf32, #tpu.memory_space<vmem>>, vector<8x1xf32>
    %5 = vector.broadcast %4 : vector<8x1xf32> to vector<8x64xf32>
    %6 = arith.addf %3, %5 : vector<8x64xf32>
    %c0_6 = arith.constant 0 : index
    %c0_7 = arith.constant 0 : index
    %c0_8 = arith.constant 0 : index
    %7 = vector.load %arg5[%c0_6, %c0_7, %c0_8] : memref<1x8x64xf32, #tpu.memory_space<vmem>>, vector<1x8x64xf32>
    %8 = vector.shape_cast %7 : vector<1x8x64xf32> to vector<8x64xf32>
    %9 = vector.shape_cast %6 : vector<8x64xf32> to vector<1x8x64xf32>
    tpu.vector_store %arg5[%c0_6, %c0_7, %c0_8], %9 {strides = array<i32>} : memref<1x8x64xf32, #tpu.memory_space<vmem>>, vector<1x8x64xf32>,
    return
  }
  func.func @transform_0(%arg0: i32, %arg1: i32) -> (i32, i32, i32) {
    %c0_i32 = arith.constant 0 : i32
    %c0_i32_0 = arith.constant 0 : i32
    return %arg0, %c0_i32, %arg1 : i32, i32, i32
  }
  func.func @transform_1(%arg0: i32, %arg1: i32) -> (i32, i32) {
    %c0_i32 = arith.constant 0 : i32
    %c0_i32_0 = arith.constant 0 : i32
    %c0_i32_1 = arith.constant 0 : i32
    return %c0_i32, %c0_i32_0 : i32, i32
  }
  func.func @transform_2(%arg0: i32, %arg1: i32) -> (i32, i32) {
    %c0_i32 = arith.constant 0 : i32
    %c0_i32_0 = arith.constant 0 : i32
    %c0_i32_1 = arith.constant 0 : i32
    return %c0_i32, %c0_i32_0 : i32, i32
  }
  func.func @transform_3(%arg0: i32, %arg1: i32) -> (i32, i32, i32) {
    %c0_i32 = arith.constant 0 : i32
    %c0_i32_0 = arith.constant 0 : i32
    return %arg0, %c0_i32, %arg1 : i32, i32, i32
  }
}

</mosaic_0001>

<llo_original>
// kernel: _lambda_.1
$region0: #{_lambda_.1}
  #allocation0 [shape = 'u32[]', space=smem, size = 0x4, offset = 0x4, fixed_abs, tag = 'smem constant byte address 0x4 - core index']
  #allocation1 [shape = 'u32[144,128]{1,0:T(1,128)}', space=vmem, size = 0x12000, scoped, tag = 'internal scratch']
  %s0 = inlined_call_operand.vmem [shape: f32[2,36,64], index: 0, kind: input, shape index: {}]
  %s1 = inlined_call_operand.vmem [shape: f32[8,36], index: 1, kind: input, shape index: {}]
  %s2 = inlined_call_operand.vmem [shape: f32[8,1], index: 2, kind: input, shape index: {}]
  %s3 = inlined_call_operand.vmem [shape: f32[2,8,64], index: 3, kind: output, shape index: {}]
  %s4 = sld [smem:[#allocation0]]
  $region45: #{_lambda_.1} parent=0
    _
  %s6 = ssub.s32 1, %s4
  %s7 = scalar_select 0, %s6, %s4
  loop: start=0, step=1, limit=4
  $region2: #{_lambda_.1} parent=0 // loop_pre_header
    _
  $region3: #{_lambda_.1} parent=0 // loop_header
    %s9 = sphi 0, %s13
    %p10 = scmp.ge.s32.totalorder %s9, 4
    %s16 = sphi 0, %s28
    %s17 = sphi 0, %s24
    %s18 = sphi 0, %s16
    %s19 = sphi 0, %s17
    %s20 = sphi 0, %s18
    %s21 = sphi 0, %s19
    %s33 = sphi 0, %s35
    %s36 = sphi 0, %s33
    %s37 = sphi 0, %s36
    %s53 = sphi 0, %s37
    %s57 = sphi 0, %s57
    %s59 = sphi 0, %s57
    %s60 = sphi 0, %s59
    %s74 = sphi 0, %s60
    %s78 = sphi 0, %s78
    %s80 = sphi 0, %s78
    %s81 = sphi 0, %s80
    %s95 = sphi 0, %s81
    %s103 = sphi 0, %s105
    %s106 = sphi 0, %s103
    %s107 = sphi 0, %s106
    %s123 = sphi 0, %s107
  $region4: #{_lambda_.1} parent=0 // loop_header_branch
    %12 = sbr.rel (%p10) target = $region8
  $region5: #{_lambda_.1} parent=0 // loop_body
    %s14 = ssub.s32 %s9, 1
    %s15 = ssub.s32 %s9, 2
    %s22 = sadd.s32 1, %s17
    %p23 = scmp.ge.s32.totalorder %s22, 1
    %s24 = scalar_select %p23, 0, %s22
    %s25 = sadd.s32 1, %s16
    %s26 = scalar_select %p23, %s25, %s16
    %p27 = scmp.ge.s32.totalorder %s26, 2
    %s28 = scalar_select %p27, 0, %s26
    %s29 = ssub.s32 %s16, %s28
    %s30 = ssub.s32 %s17, %s24
    %s31 = sor.u32 %s29, %s30
    %p32 = scmp.eq.s32.totalorder %s31, 0
    %s34 = sadd.s32 %s33, 1
    %s35 = scalar_select %p32, %s33, %s34
    %p38 = pneg %p32
    %p39 = scmp.eq.s32.totalorder %s9, 1
    %p40 = por %p38, %p39
    %p41 = scmp.ne.s32.totalorder %s33, %s36
    %p42 = scmp.eq.s32.totalorder %s9, 0
    %p43 = por %p41, %p42
    %p44 = scmp.ne.s32.totalorder %s33, %s36
    %p45 = scmp.eq.s32.totalorder %s14, 1
    %p46 = por %p44, %p45
    %p47 = scmp.ne.s32.totalorder %s36, %s37
    %p48 = scmp.eq.s32.totalorder %s14, 0
    %p49 = por %p47, %p48
    %p50 = scmp.ne.s32.totalorder %s36, %s37
    %p51 = scmp.eq.s32.totalorder %s15, 1
    %p52 = por %p50, %p51
    %p54 = scmp.ne.s32.totalorder %s37, %s53
    %p55 = scmp.eq.s32.totalorder %s15, 0
    %p56 = por %p54, %p55
    %s58 = sadd.s32 %s57, 1
    %p61 = scmp.eq.s32.totalorder %s9, 1
    %p62 = scmp.ne.s32.totalorder %s57, %s59
    %p63 = scmp.eq.s32.totalorder %s9, 0
    %p64 = por %p62, %p63
    %p65 = scmp.ne.s32.totalorder %s57, %s59
    %p66 = scmp.eq.s32.totalorder %s14, 1
    %p67 = por %p65, %p66
    %p68 = scmp.ne.s32.totalorder %s59, %s60
    %p69 = scmp.eq.s32.totalorder %s14, 0
    %p70 = por %p68, %p69
    %p71 = scmp.ne.s32.totalorder %s59, %s60
    %p72 = scmp.eq.s32.totalorder %s15, 1
    %p73 = por %p71, %p72
    %p75 = scmp.ne.s32.totalorder %s60, %s74
    %p76 = scmp.eq.s32.totalorder %s15, 0
    %p77 = por %p75, %p76
    %s79 = sadd.s32 %s78, 1
    %p82 = scmp.eq.s32.totalorder %s9, 1
    %p83 = scmp.ne.s32.totalorder %s78, %s80
    %p84 = scmp.eq.s32.totalorder %s9, 0
    %p85 = por %p83, %p84
    %p86 = scmp.ne.s32.totalorder %s78, %s80
    %p87 = scmp.eq.s32.totalorder %s14, 1
    %p88 = por %p86, %p87
    %p89 = scmp.ne.s32.totalorder %s80, %s81
    %p90 = scmp.eq.s32.totalorder %s14, 0
    %p91 = por %p89, %p90
    %p92 = scmp.ne.s32.totalorder %s80, %s81
    %p93 = scmp.eq.s32.totalorder %s15, 1
    %p94 = por %p92, %p93
    %p96 = scmp.ne.s32.totalorder %s81, %s95
    %p97 = scmp.eq.s32.totalorder %s15, 0
    %p98 = por %p96, %p97
    %s99 = ssub.s32 %s16, %s28
    %s100 = ssub.s32 %s17, %s24
    %s101 = sor.u32 %s99, %s100
    %p102 = scmp.eq.s32.totalorder %s101, 0
    %s104 = sadd.s32 %s103, 1
    %s105 = scalar_select %p102, %s103, %s104
    %p108 = pneg %p102
    %p109 = scmp.eq.s32.totalorder %s9, 1
    %p110 = por %p108, %p109
    %p111 = scmp.ne.s32.totalorder %s103, %s106
    %p112 = scmp.eq.s32.totalorder %s9, 0
    %p113 = por %p111, %p112
    %p114 = scmp.ne.s32.totalorder %s103, %s106
    %p115 = scmp.eq.s32.totalorder %s14, 1
    %p116 = por %p114, %p115
    %p117 = scmp.ne.s32.totalorder %s106, %s107
    %p118 = scmp.eq.s32.totalorder %s14, 0
    %p119 = por %p117, %p118
    %p120 = scmp.ne.s32.totalorder %s106, %s107
    %p121 = scmp.eq.s32.totalorder %s15, 1
    %p122 = por %p120, %p121
    %p124 = scmp.ne.s32.totalorder %s107, %s123
    %p125 = scmp.eq.s32.totalorder %s15, 0
    %p126 = por %p124, %p125
    %p127 = scmp.le.s32.totalorder 1, %s9
    %p128 = scmp.lt.s32.totalorder %s9, 3
    %p129 = pnand %p127, %p128
    %p130 = pneg %p129
    // Predicated region
    $region9: #{_lambda_.1} parent=5 // pred_check
      _
    $region10: #{_lambda_.1} parent=5 // pred_check_branch
      %132 = sbr.rel (%p129) target = $region12
    $region11: #{_lambda_.1} parent=5 // pred_region
      %s133 = ssub.s32 %s9, 1
      // Predicated region
      $region13: #{_lambda_.1} parent=11 // pred_check
        %p134 = pneg %p70
      $region14: #{_lambda_.1} parent=11 // pred_check_branch
        %136 = sbr.rel (%p134) target = $region16
      $region15: #{_lambda_.1} parent=11 // pred_region
        _
      $region16: #{_lambda_.1} parent=11 // pred_fallthru
        _
      // Predicated region
      $region17: #{_lambda_.1} parent=11 // pred_check
        %p137 = pneg %p91
      $region18: #{_lambda_.1} parent=11 // pred_check_branch
        %139 = sbr.rel (%p137) target = $region20
      $region19: #{_lambda_.1} parent=11 // pred_region
        _
      $region20: #{_lambda_.1} parent=11 // pred_fallthru
        _
    $region12: #{_lambda_.1} parent=5 // pred_fallthru
      _
    %p140 = scmp.lt.s32.totalorder %s9, 2
    // Predicated region
    $region21: #{_lambda_.1} parent=5 // pred_check
      %p141 = pneg %p140
    $region22: #{_lambda_.1} parent=5 // pred_check_branch
      %143 = sbr.rel (%p141) target = $region24
    $region23: #{_lambda_.1} parent=5 // pred_region
      // Predicated region
      $region25: #{_lambda_.1} parent=23 // pred_check
        %p144 = pneg %p43
      $region26: #{_lambda_.1} parent=23 // pred_check_branch
        %146 = sbr.rel (%p144) target = $region28
      $region27: #{_lambda_.1} parent=23 // pred_region
        %p147 = scmp.lt.s32.totalorder %s16, 1
        %s148 = scalar_select %p147, %s16, 1
        %p149 = scmp.lt.s32.totalorder %s17, 0
        %s150 = scalar_select %p149, %s17, 0
        %s151 = smul.addr %s148, 5
        %s152 = sadd.s32 %s150, %s151
        %s153 = smul.addr %s152, 8
        %s154 = scalar_lea.vmem %s0, %s153
      $region28: #{_lambda_.1} parent=23 // pred_fallthru
        _
    $region24: #{_lambda_.1} parent=5 // pred_fallthru
      _
    %p155 = scmp.le.s32.totalorder 1, %s9
    %p156 = scmp.lt.s32.totalorder %s9, 3
    %p157 = pnand %p155, %p156
    %p158 = pneg %p157
    // Predicated region
    $region29: #{_lambda_.1} parent=5 // pred_check
      _
    $region30: #{_lambda_.1} parent=5 // pred_check_branch
      %160 = sbr.rel (%p157) target = $region32
    $region31: #{_lambda_.1} parent=5 // pred_region
      %s161 = ssub.s32 %s9, 1
      %p162 = scmp.lt.s32.totalorder %s18, 1
      %s163 = scalar_select %p162, %s18, 1
      %p164 = scmp.lt.s32.totalorder %s19, 0
      %s165 = scalar_select %p164, %s19, 0
      %s166 = smul.addr %s163, 5
      %s167 = sadd.s32 %s165, %s166
      %s168 = smul.addr %s167, 8
      %s169 = scalar_lea.vmem %s0, %s168
      %p170 = pneg %p49
      %p171 = pneg %p46
      %p172 = pneg %p70
      %p173 = pneg %p67
      %p174 = pneg %p91
      %p175 = pneg %p88
      %p176 = pneg %p119
      %p177 = pneg %p116
      %p178 = scmp.lt.s32.totalorder %s18, 1
      %s179 = scalar_select %p178, %s18, 1
      %p180 = scmp.lt.s32.totalorder %s19, 0
      %s181 = scalar_select %p180, %s19, 0
      %s182 = sadd.s32 %s181, %s179
      %s183 = smul.addr %s182, 8
      %s184 = scalar_lea.vmem %s3, %s183
      %p185 = scmp.lt.s32.totalorder %s18, 1
      %s186 = scalar_select %p185, %s18, 1
      %p187 = scmp.lt.s32.totalorder %s19, 0
      %s188 = scalar_select %p187, %s19, 0
      %s189 = smul.addr %s186, 5
      %s190 = sadd.s32 %s188, %s189
      %s191 = smul.addr %s190, 8
      %s192 = scalar_lea.vmem %s0, %s191
      %p193 = scmp.lt.s32.totalorder %s18, 1
      %s194 = scalar_select %p193, %s18, 1
      %p195 = scmp.lt.s32.totalorder %s19, 0
      %s196 = scalar_select %p195, %s19, 0
      %s197 = sadd.s32 %s196, %s194
      %s198 = smul.addr %s197, 8
      %s199 = scalar_lea.vmem %s3, %s198
      %v200 = vld [vmem:[%s1] sm:$0xff]
      %v201 = vld [vmem:[%s192] sm:$0xff]
      %v202 = vld [vmem:[%s192 + $0x8] sm:$0xff]
      %v203 = vld [vmem:[%s192 + $0x10] sm:$0xff]
      %v204 = vld [vmem:[%s192 + $0x18] sm:$0xff]
      %v205 = vld [vmem:[%s192 + $0x20] sm:$0xf]
      %v206 = vld [vmem:[%s2] sm:$0xff]
      %208 = vset.pattern.permute.xlu0 0
      %209 = vperm.xlu0 %208, %v206
      %v210 = vpop.permute.xlu0 %209
      %vm212 = vcmask 293888
      %v214 = vsel %vm212, %v200, 0
      %vm216 = vcmask 1043456
      %v218 = vsel %vm216, %v205, 0
      %220 = vmatprep.subr.mxu0 0.0
      %221 = vmatpush1.msra.mxu0 %v201
      %222 = vmatprep.subr.mxu0 0.0
      %223 = vmatpush1.msra.mxu0 %v202
      %224 = vmatprep.subr.mxu0 0.0
      %225 = vmatpush1.msra.mxu0 %v203
      %226 = vmatprep.subr.mxu0 0.0
      %227 = vmatpush1.msra.mxu0 %v204
      %228 = vmatprep.subr.mxu0 0.0
      %229 = vmatpush1.msra.mxu0 %v218
      %230 = vmatprep.subr.mxu0 0.0
      %231 = vmatpush1.msra.mxu0 0.0
      %232 = vmatprep.subr.mxu0 0.0
      %233 = vmatpush1.msra.mxu0 0.0
      %234 = vmatprep.subr.mxu0 0.0
      %235 = vmatpush1.msra.mxu0 0.0
      %236 = vmatprep.subr.mxu0 0.0
      %237 = vmatpush1.msra.mxu0 0.0
      %238 = vmatprep.subr.mxu0 0.0
      %239 = vmatpush1.msra.mxu0 0.0
      %240 = vmatprep.subr.mxu0 0.0
      %241 = vmatpush1.msra.mxu0 0.0
      %242 = vmatprep.subr.mxu0 0.0
      %243 = vmatpush1.msra.mxu0 0.0
      %244 = vmatprep.subr.mxu0 0.0
      %245 = vmatpush1.msra.mxu0 0.0
      %246 = vmatprep.subr.mxu0 0.0
      %247 = vmatpush1.msra.mxu0 0.0
      %248 = vmatprep.subr.mxu0 0.0
      %249 = vmatpush1.msra.mxu0 0.0
      %250 = vmatprep.subr.mxu0 0.0
      %251 = vmatpush1.msra.mxu0 0.0
      %252 = vmatprep.subr.mxu0 0.0
      %253 = vmatpush1.msra.mxu0 0.0
      %254 = vmatprep.subr.mxu0 0.0
      %255 = vmatpush1.msra.mxu0 0.0
      %256 = vmatprep.subr.mxu0 0.0
      %257 = vmatpush1.msra.mxu0 0.0
      %258 = vmatprep.subr.mxu0 0.0
      %259 = vmatpush1.msra.mxu0 0.0
      %260 = vmatprep.subr.mxu0 0.0
      %261 = vmatpush1.msra.mxu0 0.0
      %262 = vmatprep.subr.mxu0 0.0
      %263 = vmatpush1.msra.mxu0 0.0
      %264 = vmatprep.subr.mxu0 0.0
      %265 = vmatpush1.msra.mxu0 0.0
      %266 = vmatprep.subr.mxu0 0.0
      %267 = vmatpush1.msra.mxu0 0.0
      %268 = vmatprep.subr.mxu0 0.0
      %269 = vmatpush1.msra.mxu0 0.0
      %270 = vmatprep.subr.mxu0 0.0
      %271 = vmatpush1.msra.mxu0 0.0
      %272 = vmatprep.subr.mxu0 0.0
      %273 = vmatpush1.msra.mxu0 0.0
      %274 = vmatprep.subr.mxu0 0.0
      %275 = vmatpush1.msra.mxu0 0.0
      %276 = vmatprep.subr.mxu0 0.0
      %277 = vmatpush1.msra.mxu0 0.0
      %278 = vmatprep.subr.mxu0 0.0
      %279 = vmatpush1.msra.mxu0 0.0
      %280 = vmatprep.subr.mxu0 0.0
      %281 = vmatpush1.msra.mxu0 0.0
      %282 = vmatprep.subr.mxu0 0.0
      %283 = vmatpush1.msra.mxu0 0.0
      %284 = vmatprep.mubr.f32.mxu0 0.0
      %285 = vmatmul.mubr.f32.gmra.mrb[0].mxu0 %v214
      %v286 = vpop.f32.mrb[0].mxu0
      %v287 = vadd.f32 %v210, %v286
      %v288 = vpop.f32.mrb[0].mxu0
      %289 = vdwg.mxu0
      %vm290 = vcmask 523264
      %291 = vst.msk [vmem:[%s199] sm:$0xff] %vm290, %v287
      %p292 = scmp.lt.s32.totalorder %s18, 1
      %s293 = scalar_select %p292, %s18, 1
      %p294 = scmp.lt.s32.totalorder %s19, 0
      %s295 = scalar_select %p294, %s19, 0
      %s296 = sadd.s32 %s295, %s293
      %s297 = smul.addr %s296, 8
      %s298 = scalar_lea.vmem %s3, %s297
      // Predicated region
      $region33: #{_lambda_.1} parent=31 // pred_check
        %p299 = pneg %p116
      $region34: #{_lambda_.1} parent=31 // pred_check_branch
        %301 = sbr.rel (%p299) target = $region36
      $region35: #{_lambda_.1} parent=31 // pred_region
        _
      $region36: #{_lambda_.1} parent=31 // pred_fallthru
        _
    $region32: #{_lambda_.1} parent=5 // pred_fallthru
      _
    %p302 = scmp.le.s32.totalorder 2, %s9
    // Predicated region
    $region37: #{_lambda_.1} parent=5 // pred_check
      %p303 = pneg %p302
    $region38: #{_lambda_.1} parent=5 // pred_check_branch
      %305 = sbr.rel (%p303) target = $region40
    $region39: #{_lambda_.1} parent=5 // pred_region
      %s306 = ssub.s32 %s9, 2
      // Predicated region
      $region41: #{_lambda_.1} parent=39 // pred_check
        %p307 = pneg %p122
      $region42: #{_lambda_.1} parent=39 // pred_check_branch
        %309 = sbr.rel (%p307) target = $region44
      $region43: #{_lambda_.1} parent=39 // pred_region
        %p310 = scmp.lt.s32.totalorder %s20, 1
        %s311 = scalar_select %p310, %s20, 1
        %p312 = scmp.lt.s32.totalorder %s21, 0
        %s313 = scalar_select %p312, %s21, 0
        %s314 = sadd.s32 %s313, %s311
        %s315 = smul.addr %s314, 8
        %s316 = scalar_lea.vmem %s3, %s315
      $region44: #{_lambda_.1} parent=39 // pred_fallthru
        _
    $region40: #{_lambda_.1} parent=5 // pred_fallthru
      _
  $region6: #{_lambda_.1} parent=0 // loop_footer
    %s13 = sadd.s32 1, %s9
  $region7: #{_lambda_.1} parent=0 // loop_footer_branch
    %8 = sbr.rel target = $region3
  $region8: #{_lambda_.1} parent=0 // loop_exit
    _

</llo_original>
